<compile_context>
chip_gen: v7x
topology: tpu7x:2x2x1
jax: 0.10.0
libtpu: 0.0.40
codegen_flags: <defaults>
</compile_context>

<pallas_src>
import jax
import jax.numpy as jnp
from jax import lax
from jax.experimental import pallas as pl
from jax.experimental.pallas import tpu as pltpu

OUT_PAD = 128    # lane-dense padded scalar-output width


def _round_up(x, m):
    return ((x + m - 1) // m) * m


# ---------------------------------------------------------------------------
# Fused kernel: conv(3x3, pad=1) + ReLU + global-avg-pool + fc1 + ReLU + fc2
# for one block of B images per grid step.
# ---------------------------------------------------------------------------
def conv_pool_fc_kernel(lhs_ref, wc_ref, bc_ref, pm_ref, w1_ref, b1_ref,
                        w2_ref, b2_ref, out_ref):
    # lhs_ref: (1, B*HWp, Kp)      bf16  9-tap im2col rows (zero-padded K/rows)
    # wc_ref:  (Kp, CoutP)         bf16  conv weights, (tap, cin) stacked on K
    # bc_ref:  (1, CoutP)          f32   conv bias (zero-padded)
    # pm_ref:  (B, B*HWp)          bf16  block-diag pool weights (1/(H*W), 0 on pad)
    # w1_ref:  (CoutP, Hid)        bf16
    # b1_ref:  (1, Hid)            f32
    # w2_ref:  (Hid, OUT_PAD)      bf16  (only col 0 nonzero)
    # b2_ref:  (1, OUT_PAD)        f32
    # out_ref: (1, B, OUT_PAD)     f32
    lhs = lhs_ref[0]                                            # (B*HWp, Kp)
    # Single K=9*Cin (lane-padded) MXU matmul == the whole 3x3 conv.
    feat = jnp.dot(lhs, wc_ref[...], preferred_element_type=jnp.float32)
    feat = jnp.maximum(feat + bc_ref[...], 0.0)                 # (B*HWp, CoutP) f32
    # Global average pool as a block-diagonal mask matmul (MXU, bf16 operands).
    pooled = jnp.dot(pm_ref[...], feat.astype(jnp.bfloat16),
                     preferred_element_type=jnp.float32)        # (B, CoutP) f32
    # Fused regression head.
    h = jnp.dot(pooled.astype(jnp.bfloat16), w1_ref[...],
                preferred_element_type=jnp.float32)
    h = jnp.maximum(h + b1_ref[...], 0.0)                       # (B, Hid) f32
    out = jnp.dot(h.astype(jnp.bfloat16), w2_ref[...],
                  preferred_element_type=jnp.float32) + b2_ref[...]
    out_ref[0] = out                                            # (B, OUT_PAD)


# ---------------------------------------------------------------------------
# Wrapper: Net.forward(x1, x2) with x1, x2 in NCHW (PyTorch convention).
# ---------------------------------------------------------------------------
def net_forward(x1_nchw, x2_nchw, params):
    w_conv, b_conv, w1, b1, w2, b2 = params

    # torch.cat([x1, x2], dim=1), then NCHW -> NHWC for lane-major channels.
    x = jnp.concatenate([x1_nchw, x2_nchw], axis=1)             # (N, 2C, H, W)
    x_nhwc = jnp.transpose(x, (0, 2, 3, 1))                     # (N, H, W, Cin)
    N, H, W, Cin = x_nhwc.shape
    Cout = w_conv.shape[0]
    Hid = w1.shape[1]

    K = 9 * Cin                                                 # fused-tap depth
    Kp = _round_up(max(K, 128), 128)                            # lane-dense LHS
    CoutP = _round_up(max(Cout, 128), 128)
    HW = H * W
    HWp = _round_up(HW, 8)                                      # sublane-aligned rows

    # Images per grid step: batch per step to amortize per-step overhead but
    # keep >= 2 parallel steps when N >= 2 (v7x megacore).
    num_steps = 2 if N >= 2 else 1
    B = min(32, -(-N // num_steps))
    num_steps = -(-N // B)
    Npad = num_steps * B
    BHW = B * HWp

    # --- 9-tap im2col LHS (wrapper-side; fine at small spatial sizes). -------
    xp = jnp.pad(x_nhwc, ((0, 0), (1, 1), (1, 1), (0, 0)))      # conv pad = 1
    taps = [xp[:, dh:dh + H, dw:dw + W, :]
            for dh in range(3) for dw in range(3)]              # each (N,H,W,Cin)
    lhs = jnp.concatenate(taps, axis=-1).reshape(N, HW, K)      # (N, HW, 9*Cin)
    lhs = lhs.astype(jnp.bfloat16)
    lhs = jnp.pad(lhs, ((0, Npad - N), (0, HWp - HW), (0, Kp - K)))
    lhs = lhs.reshape(num_steps, BHW, Kp)

    # --- conv weights: (Cout, Cin, 3, 3) -> (kh, kw, cin, cout) -> (K, Cout). -
    wc = jnp.transpose(w_conv, (2, 3, 1, 0)).reshape(K, Cout).astype(jnp.bfloat16)
    wc_pad = jnp.pad(wc, ((0, Kp - K), (0, CoutP - Cout)))
    bc_pad = jnp.pad(b_conv.astype(jnp.float32).reshape(1, Cout),
                     ((0, 0), (0, CoutP - Cout)))

    # --- block-diagonal pool mask with 1/(H*W) folded in; padded rows get 0. -
    row = jnp.arange(B)[:, None]
    col = jnp.arange(BHW)[None, :]
    valid = (col // HWp == row) & (col % HWp < HW)
    pm = jnp.where(valid, 1.0 / HW, 0.0).astype(jnp.bfloat16)   # (B, B*HWp)

    # --- FC weights, zero-padded so padded lanes stay exactly zero. ----------
    w1_pad = jnp.pad(w1.astype(jnp.bfloat16), ((0, CoutP - Cout), (0, 0)))
    b1_row = b1.astype(jnp.float32).reshape(1, Hid)
    w2_pad = jnp.pad(w2.astype(jnp.bfloat16), ((0, 0), (0, OUT_PAD - w2.shape[1])))
    b2_row = jnp.pad(b2.astype(jnp.float32).reshape(1, -1),
                     ((0, 0), (0, OUT_PAD - b2.shape[0])))

    out3 = pl.pallas_call(
        conv_pool_fc_kernel,
        out_shape=jax.ShapeDtypeStruct((num_steps, B, OUT_PAD), jnp.float32),
        grid_spec=pltpu.PrefetchScalarGridSpec(
            num_scalar_prefetch=0,
            grid=(num_steps,),
            in_specs=[
                pl.BlockSpec((1, BHW, Kp), lambda i: (i, 0, 0)),   # im2col LHS
                pl.BlockSpec((Kp, CoutP), lambda i: (0, 0)),       # conv W (resident)
                pl.BlockSpec((1, CoutP), lambda i: (0, 0)),        # conv b
                pl.BlockSpec((B, BHW), lambda i: (0, 0)),          # pool mask
                pl.BlockSpec((CoutP, Hid), lambda i: (0, 0)),      # fc1 W
                pl.BlockSpec((1, Hid), lambda i: (0, 0)),          # fc1 b
                pl.BlockSpec((Hid, OUT_PAD), lambda i: (0, 0)),    # fc2 W
                pl.BlockSpec((1, OUT_PAD), lambda i: (0, 0)),      # fc2 b
            ],
            out_specs=pl.BlockSpec((1, B, OUT_PAD), lambda i: (i, 0, 0)),
        ),
        compiler_params=pltpu.CompilerParams(
            dimension_semantics=("parallel",),
            vmem_limit_bytes=64 * 1024 * 1024),
    )(lhs, wc_pad, bc_pad, pm, w1_pad, b1_row, w2_pad, b2_row)

    return out3.reshape(Npad, OUT_PAD)[:N, :1]                  # (N, 1)


# ---------------------------------------------------------------------------
# Pure-JAX reference (PyTorch NCHW f32 semantics) for verification.
# ---------------------------------------------------------------------------
def net_forward_ref(x1, x2, params):
    w_conv, b_conv, w1, b1, w2, b2 = params
    x = jnp.concatenate([x1, x2], axis=1)                       # (N, 2C, H, W)
    y = lax.conv_general_dilated(
        x, w_conv, window_strides=(1, 1), padding=((1, 1), (1, 1)),
        dimension_numbers=("NCHW", "OIHW", "NCHW"))
    y = jnp.maximum(y + b_conv[None, :, None, None], 0.0)
    f1 = jnp.mean(y, axis=(2, 3))                               # (N, Cout)
    h = jnp.maximum(f1 @ w1 + b1, 0.0)
    return h @ w2 + b2[None, :]                                 # (N, 1)


if __name__ == "__main__":
    # Small shapes consistent with the module's forward (two NCHW images).
    N, C, H, W = 2, 4, 16, 16
    Cout, Hid = 16, 32

    key = jax.random.PRNGKey(0)
    k_x1, k_x2, k_wc, k_bc, k_w1, k_b1, k_w2, k_b2 = jax.random.split(key, 8)

    x1 = jax.random.normal(k_x1, (N, C, H, W), jnp.float32)
    x2 = jax.random.normal(k_x2, (N, C, H, W), jnp.float32)

    # Deterministic synthetic parameters (shapes follow the module structure).
    w_conv = 0.1 * jax.random.normal(k_wc, (Cout, 2 * C, 3, 3), jnp.float32)
    b_conv = 0.1 * jax.random.normal(k_bc, (Cout,), jnp.float32)
    w1 = 0.1 * jax.random.normal(k_w1, (Cout, Hid), jnp.float32)
    b1 = 0.1 * jax.random.normal(k_b1, (Hid,), jnp.float32)
    w2 = 0.1 * jax.random.normal(k_w2, (Hid, 1), jnp.float32)
    b2 = 0.1 * jax.random.normal(k_b2, (1,), jnp.float32)
    params = (w_conv, b_conv, w1, b1, w2, b2)

    out = jax.block_until_ready(net_forward(x1, x2, params))
    ref = jax.block_until_ready(net_forward_ref(x1, x2, params))

    assert out.shape == (N, 1)
    # bf16 operands everywhere with f32 accumulation -> loosened tolerance.
    assert jnp.allclose(out, ref, atol=3e-2, rtol=3e-2)
    print("KERNEL_OK")
</pallas_src>

<mosaic_0001>
module attributes {stable_mosaic.version = 11 : i64} {
  func.func @conv_pool_fc_kernel(%arg0: i32, %arg1: memref<1x256x128xbf16, #tpu.memory_space<vmem>>, %arg2: memref<128x128xbf16, #tpu.memory_space<vmem>>, %arg3: memref<1x128xf32, #tpu.memory_space<vmem>>, %arg4: memref<1x256xbf16, #tpu.memory_space<vmem>>, %arg5: memref<128x32xbf16, #tpu.memory_space<vmem>>, %arg6: memref<1x32xf32, #tpu.memory_space<vmem>>, %arg7: memref<32x128xbf16, #tpu.memory_space<vmem>>, %arg8: memref<1x128xf32, #tpu.memory_space<vmem>>, %arg9: memref<1x1x128xf32, #tpu.memory_space<vmem>>) attributes {dimension_semantics = [#tpu.dimension_semantics<parallel>], iteration_bounds = array<i64: 2>, scalar_prefetch = 0 : i64, scratch_operands = 0 : i64, tpu.core_type = #tpu.core_type<tc>, window_params = [{transform_indices = @transform_0, window_bounds = array<i64: 1, 256, 128>}, {pipeline_mode = #tpu.pipeline_mode<synchronous>, transform_indices = @transform_1, window_bounds = array<i64: 128, 128>}, {pipeline_mode = #tpu.pipeline_mode<synchronous>, transform_indices = @transform_2, window_bounds = array<i64: 1, 128>}, {pipeline_mode = #tpu.pipeline_mode<synchronous>, transform_indices = @transform_3, window_bounds = array<i64: 1, 256>}, {pipeline_mode = #tpu.pipeline_mode<synchronous>, transform_indices = @transform_4, window_bounds = array<i64: 128, 32>}, {pipeline_mode = #tpu.pipeline_mode<synchronous>, transform_indices = @transform_5, window_bounds = array<i64: 1, 32>}, {pipeline_mode = #tpu.pipeline_mode<synchronous>, transform_indices = @transform_6, window_bounds = array<i64: 32, 128>}, {pipeline_mode = #tpu.pipeline_mode<synchronous>, transform_indices = @transform_7, window_bounds = array<i64: 1, 128>}, {transform_indices = @transform_8, window_bounds = array<i64: 1, 1, 128>}]} {
    %c0 = arith.constant 0 : index
    %c0_0 = arith.constant 0 : index
    %c0_1 = arith.constant 0 : index
    %0 = vector.load %arg1[%c0, %c0_0, %c0_1] : memref<1x256x128xbf16, #tpu.memory_space<vmem>>, vector<1x256x128xbf16>
    %1 = vector.shape_cast %0 : vector<1x256x128xbf16> to vector<256x128xbf16>
    %c0_2 = arith.constant 0 : index
    %c0_3 = arith.constant 0 : index
    %2 = vector.load %arg2[%c0_2, %c0_3] : memref<128x128xbf16, #tpu.memory_space<vmem>>, vector<128x128xbf16>
    %cst = arith.constant dense<0.000000e+00> : vector<256x128xf32>
    %3 = tpu.matmul %1, %2, %cst {dimension_numbers = #tpu.dot_dimension_numbers<[1], [0], [0], [1], [0, 0, 1, 1], [], []>} : vector<256x128xbf16>, vector<128x128xbf16>, vector<256x128xf32> -> vector<256x128xf32>
    %c0_4 = arith.constant 0 : index
    %c0_5 = arith.constant 0 : index
    %4 = vector.load %arg3[%c0_4, %c0_5] : memref<1x128xf32, #tpu.memory_space<vmem>>, vector<1x128xf32>
    %5 = vector.broadcast %4 : vector<1x128xf32> to vector<256x128xf32>
    %6 = arith.addf %3, %5 : vector<256x128xf32>
    %cst_6 = arith.constant 0.000000e+00 : f32
    %7 = vector.broadcast %cst_6 : f32 to vector<256x128xf32>
    %8 = arith.maximumf %6, %7 : vector<256x128xf32>
    %c0_7 = arith.constant 0 : index
    %c0_8 = arith.constant 0 : index
    %9 = vector.load %arg4[%c0_7, %c0_8] : memref<1x256xbf16, #tpu.memory_space<vmem>>, vector<1x256xbf16>
    %10 = arith.truncf %8 : vector<256x128xf32> to vector<256x128xbf16>
    %cst_9 = arith.constant dense<0.000000e+00> : vector<1x128xf32>
    %11 = tpu.matmul %9, %10, %cst_9 {dimension_numbers = #tpu.dot_dimension_numbers<[1], [0], [0], [1], [0, 0, 1, 1], [], []>} : vector<1x256xbf16>, vector<256x128xbf16>, vector<1x128xf32> -> vector<1x128xf32>
    %12 = arith.truncf %11 : vector<1x128xf32> to vector<1x128xbf16>
    %c0_10 = arith.constant 0 : index
    %c0_11 = arith.constant 0 : index
    %13 = vector.load %arg5[%c0_10, %c0_11] : memref<128x32xbf16, #tpu.memory_space<vmem>>, vector<128x32xbf16>
    %cst_12 = arith.constant dense<0.000000e+00> : vector<1x32xf32>
    %14 = tpu.matmul %12, %13, %cst_12 {dimension_numbers = #tpu.dot_dimension_numbers<[1], [0], [0], [1], [0, 0, 1, 1], [], []>} : vector<1x128xbf16>, vector<128x32xbf16>, vector<1x32xf32> -> vector<1x32xf32>
    %c0_13 = arith.constant 0 : index
    %c0_14 = arith.constant 0 : index
    %15 = vector.load %arg6[%c0_13, %c0_14] : memref<1x32xf32, #tpu.memory_space<vmem>>, vector<1x32xf32>
    %16 = arith.addf %14, %15 : vector<1x32xf32>
    %cst_15 = arith.constant 0.000000e+00 : f32
    %17 = vector.broadcast %cst_15 : f32 to vector<1x32xf32>
    %18 = arith.maximumf %16, %17 : vector<1x32xf32>
    %19 = arith.truncf %18 : vector<1x32xf32> to vector<1x32xbf16>
    %c0_16 = arith.constant 0 : index
    %c0_17 = arith.constant 0 : index
    %20 = vector.load %arg7[%c0_16, %c0_17] : memref<32x128xbf16, #tpu.memory_space<vmem>>, vector<32x128xbf16>
    %cst_18 = arith.constant dense<0.000000e+00> : vector<1x128xf32>
    %21 = tpu.matmul %19, %20, %cst_18 {dimension_numbers = #tpu.dot_dimension_numbers<[1], [0], [0], [1], [0, 0, 1, 1], [], []>} : vector<1x32xbf16>, vector<32x128xbf16>, vector<1x128xf32> -> vector<1x128xf32>
    %c0_19 = arith.constant 0 : index
    %c0_20 = arith.constant 0 : index
    %22 = vector.load %arg8[%c0_19, %c0_20] : memref<1x128xf32, #tpu.memory_space<vmem>>, vector<1x128xf32>
    %23 = arith.addf %21, %22 : vector<1x128xf32>
    %c0_21 = arith.constant 0 : index
    %c0_22 = arith.constant 0 : index
    %c0_23 = arith.constant 0 : index
    %24 = vector.load %arg9[%c0_21, %c0_22, %c0_23] : memref<1x1x128xf32, #tpu.memory_space<vmem>>, vector<1x1x128xf32>
    %25 = vector.shape_cast %24 : vector<1x1x128xf32> to vector<1x128xf32>
    %26 = vector.shape_cast %23 : vector<1x128xf32> to vector<1x1x128xf32>
    tpu.vector_store %arg9[%c0_21, %c0_22, %c0_23], %26 {strides = array<i32>} : memref<1x1x128xf32, #tpu.memory_space<vmem>>, vector<1x1x128xf32>,
    return
  }
  func.func @transform_0(%arg0: i32) -> (i32, i32, i32) {
    %c0_i32 = arith.constant 0 : i32
    %c0_i32_0 = arith.constant 0 : i32
    %c0_i32_1 = arith.constant 0 : i32
    return %arg0, %c0_i32, %c0_i32_0 : i32, i32, i32
  }
  func.func @transform_1(%arg0: i32) -> (i32, i32) {
    %c0_i32 = arith.constant 0 : i32
    %c0_i32_0 = arith.constant 0 : i32
    %c0_i32_1 = arith.constant 0 : i32
    return %c0_i32, %c0_i32_0 : i32, i32
  }
  func.func @transform_2(%arg0: i32) -> (i32, i32) {
    %c0_i32 = arith.constant 0 : i32
    %c0_i32_0 = arith.constant 0 : i32
    %c0_i32_1 = arith.constant 0 : i32
    return %c0_i32, %c0_i32_0 : i32, i32
  }
  func.func @transform_3(%arg0: i32) -> (i32, i32) {
    %c0_i32 = arith.constant 0 : i32
    %c0_i32_0 = arith.constant 0 : i32
    %c0_i32_1 = arith.constant 0 : i32
    return %c0_i32, %c0_i32_0 : i32, i32
  }
  func.func @transform_4(%arg0: i32) -> (i32, i32) {
    %c0_i32 = arith.constant 0 : i32
    %c0_i32_0 = arith.constant 0 : i32
    %c0_i32_1 = arith.constant 0 : i32
    return %c0_i32, %c0_i32_0 : i32, i32
  }
  func.func @transform_5(%arg0: i32) -> (i32, i32) {
    %c0_i32 = arith.constant 0 : i32
    %c0_i32_0 = arith.constant 0 : i32
    %c0_i32_1 = arith.constant 0 : i32
    return %c0_i32, %c0_i32_0 : i32, i32
  }
  func.func @transform_6(%arg0: i32) -> (i32, i32) {
    %c0_i32 = arith.constant 0 : i32
    %c0_i32_0 = arith.constant 0 : i32
    %c0_i32_1 = arith.constant 0 : i32
    return %c0_i32, %c0_i32_0 : i32, i32
  }
  func.func @transform_7(%arg0: i32) -> (i32, i32) {
    %c0_i32 = arith.constant 0 : i32
    %c0_i32_0 = arith.constant 0 : i32
    %c0_i32_1 = arith.constant 0 : i32
    return %c0_i32, %c0_i32_0 : i32, i32
  }
  func.func @transform_8(%arg0: i32) -> (i32, i32, i32) {
    %c0_i32 = arith.constant 0 : i32
    %c0_i32_0 = arith.constant 0 : i32
    %c0_i32_1 = arith.constant 0 : i32
    return %arg0, %c0_i32, %c0_i32_0 : i32, i32, i32
  }
}

</mosaic_0001>

<llo_original>
// kernel: tpu_custom_call.1
$region0: #{tpu_custom_call.1}
  #allocation0 [shape = 'u32[]', space=smem, size = 0x4, offset = 0x4, fixed_abs, tag = 'smem constant byte address 0x4 - core index']
  #allocation1 [shape = 'u32[144,128]{1,0:T(1,128)}', space=vmem, size = 0x12000, scoped, tag = 'internal scratch']
  %s0 = inlined_call_operand.hbm [shape: bf16[2,256,128], index: 0, kind: input, shape index: {}]
  %s1 = inlined_call_operand.hbm [shape: bf16[128,128], index: 1, kind: input, shape index: {}]
  %s2 = inlined_call_operand.hbm [shape: f32[1,128], index: 2, kind: input, shape index: {}]
  %s3 = inlined_call_operand.hbm [shape: bf16[1,256], index: 3, kind: input, shape index: {}]
  %s4 = inlined_call_operand.hbm [shape: bf16[128,32], index: 4, kind: input, shape index: {}]
  %s5 = inlined_call_operand.hbm [shape: f32[1,32], index: 5, kind: input, shape index: {}]
  %s6 = inlined_call_operand.hbm [shape: bf16[32,128], index: 6, kind: input, shape index: {}]
  %s7 = inlined_call_operand.hbm [shape: f32[1,128], index: 7, kind: input, shape index: {}]
  %s8 = inlined_call_operand.hbm [shape: f32[2,1,128], index: 8, kind: output, shape index: {}]
  %s9 = sld [smem:[#allocation0]]
  $region97: #{tpu_custom_call.1} parent=0
    _
  %s11 = ssub.s32 1, %s9
  %s12 = scalar_select 0, %s11, %s9
  $region1: #{tpu_custom_call.1} parent=0
    #allocation2 [shape = 'u8[131072]{0}', space=vmem, size = 0x20000, scoped, tag = 'input window, operand 0']
    #allocation3 [shape = 's32[2]{0}', space=sflag, size = 0x8, scoped, tag = 'scoped memory for tpu_custom_call.1']
    #allocation4 [shape = 's32[2]{0}', space=sflag, size = 0x8, scoped, tag = 'scoped memory for tpu_custom_call.1']
    #allocation5 [shape = 'u8[32768]{0}', space=vmem, size = 0x8000, scoped, tag = 'input window, operand 1, single buffered']
    #allocation6 [shape = 's32[1]{0}', space=sflag, size = 0x4, scoped, tag = 'scoped memory for tpu_custom_call.1']
    #allocation7 [shape = 'u8[512]{0}', space=vmem, size = 0x400, scoped, tag = 'input window, operand 2, single buffered']
    #allocation8 [shape = 'u8[1024]{0}', space=vmem, size = 0x400, scoped, tag = 'input window, operand 3, single buffered']
    #allocation9 [shape = 's32[1]{0}', space=sflag, size = 0x4, scoped, tag = 'scoped memory for tpu_custom_call.1']
    #allocation10 [shape = 'u8[32768]{0}', space=vmem, size = 0x8000, scoped, tag = 'input window, operand 4, single buffered']
    #allocation11 [shape = 'u8[512]{0}', space=vmem, size = 0x400, scoped, tag = 'input window, operand 5, single buffered']
    #allocation12 [shape = 's32[1]{0}', space=sflag, size = 0x4, scoped, tag = 'scoped memory for tpu_custom_call.1']
    #allocation13 [shape = 'u8[8192]{0}', space=vmem, size = 0x2000, scoped, tag = 'input window, operand 6, single buffered']
    #allocation14 [shape = 'u8[512]{0}', space=vmem, size = 0x400, scoped, tag = 'input window, operand 7, single buffered']
    #allocation15 [shape = 's32[1]{0}', space=sflag, size = 0x4, scoped, tag = 'scoped memory for tpu_custom_call.1']
    #allocation16 [shape = 'u8[1024]{0}', space=vmem, size = 0x400, scoped, tag = 'output window, operand 0']
    %13 = vsyncpa [#allocation3], 0
    %s14 = scalar_lea.sflag [#allocation3], 1
    %15 = vsyncpa %s14, 0
    %16 = vsyncpa [#allocation6], 0
    %17 = vsyncpa [#allocation9], 0
    %18 = vsyncpa [#allocation12], 0
    %19 = vsyncpa [#allocation15], 0
    %20 = vsyncpa [#allocation4], 0
    %s21 = scalar_lea.sflag [#allocation4], 1
    %22 = vsyncpa %s21, 0
    loop: start=0, step=1, limit=4
    $region2: #{tpu_custom_call.1} parent=1 // loop_pre_header
      _
    $region3: #{tpu_custom_call.1} parent=1 // loop_header
      %s24 = sphi 0, %s28
      %p25 = scmp.ge.s32.totalorder %s24, 4
      %s34 = sphi 0, %s36
      %s37 = sphi 0, %s34
      %s38 = sphi 0, %s37
      %s54 = sphi 0, %s38
      %s58 = sphi 0, %s58
      %s60 = sphi 0, %s58
      %s61 = sphi 0, %s60
      %s75 = sphi 0, %s61
      %s79 = sphi 0, %s79
      %s81 = sphi 0, %s79
      %s82 = sphi 0, %s81
      %s96 = sphi 0, %s82
      %s100 = sphi 0, %s100
      %s102 = sphi 0, %s100
      %s103 = sphi 0, %s102
      %s117 = sphi 0, %s103
      %s121 = sphi 0, %s121
      %s123 = sphi 0, %s121
      %s124 = sphi 0, %s123
      %s138 = sphi 0, %s124
      %s142 = sphi 0, %s142
      %s144 = sphi 0, %s142
      %s145 = sphi 0, %s144
      %s159 = sphi 0, %s145
      %s163 = sphi 0, %s163
      %s165 = sphi 0, %s163
      %s166 = sphi 0, %s165
      %s180 = sphi 0, %s166
      %s184 = sphi 0, %s184
      %s186 = sphi 0, %s184
      %s187 = sphi 0, %s186
      %s201 = sphi 0, %s187
      %s207 = sphi 0, %s209
      %s210 = sphi 0, %s207
      %s211 = sphi 0, %s210
      %s227 = sphi 0, %s211
    $region4: #{tpu_custom_call.1} parent=1 // loop_header_branch
      %27 = sbr.rel (%p25) target = $region8
    $region5: #{tpu_custom_call.1} parent=1 // loop_body
      %s29 = ssub.s32 %s24, 1
      %s30 = ssub.s32 %s24, 2
      %s31 = sadd.s32 %s24, 1
      %s32 = ssub.s32 %s24, %s31
      %p33 = scmp.eq.s32.totalorder %s32, 0
      %s35 = sadd.s32 %s34, 1
      %s36 = scalar_select %p33, %s34, %s35
      %p39 = pneg %p33
      %p40 = scmp.eq.s32.totalorder %s24, 1
      %p41 = por %p39, %p40
      %p42 = scmp.ne.s32.totalorder %s34, %s37
      %p43 = scmp.eq.s32.totalorder %s24, 0
      %p44 = por %p42, %p43
      %p45 = scmp.ne.s32.totalorder %s34, %s37
      %p46 = scmp.eq.s32.totalorder %s29, 1
      %p47 = por %p45, %p46
      %p48 = scmp.ne.s32.totalorder %s37, %s38
      %p49 = scmp.eq.s32.totalorder %s29, 0
      %p50 = por %p48, %p49
      %p51 = scmp.ne.s32.totalorder %s37, %s38
      %p52 = scmp.eq.s32.totalorder %s30, 1
      %p53 = por %p51, %p52
      %p55 = scmp.ne.s32.totalorder %s38, %s54
      %p56 = scmp.eq.s32.totalorder %s30, 0
      %p57 = por %p55, %p56
      %s59 = sadd.s32 %s58, 1
      %p62 = scmp.eq.s32.totalorder %s24, 1
      %p63 = scmp.ne.s32.totalorder %s58, %s60
      %p64 = scmp.eq.s32.totalorder %s24, 0
      %p65 = por %p63, %p64
      %p66 = scmp.ne.s32.totalorder %s58, %s60
      %p67 = scmp.eq.s32.totalorder %s29, 1
      %p68 = por %p66, %p67
      %p69 = scmp.ne.s32.totalorder %s60, %s61
      %p70 = scmp.eq.s32.totalorder %s29, 0
      %p71 = por %p69, %p70
      %p72 = scmp.ne.s32.totalorder %s60, %s61
      %p73 = scmp.eq.s32.totalorder %s30, 1
      %p74 = por %p72, %p73
      %p76 = scmp.ne.s32.totalorder %s61, %s75
      %p77 = scmp.eq.s32.totalorder %s30, 0
      %p78 = por %p76, %p77
      %s80 = sadd.s32 %s79, 1
      %p83 = scmp.eq.s32.totalorder %s24, 1
      %p84 = scmp.ne.s32.totalorder %s79, %s81
      %p85 = scmp.eq.s32.totalorder %s24, 0
      %p86 = por %p84, %p85
      %p87 = scmp.ne.s32.totalorder %s79, %s81
      %p88 = scmp.eq.s32.totalorder %s29, 1
      %p89 = por %p87, %p88
      %p90 = scmp.ne.s32.totalorder %s81, %s82
      %p91 = scmp.eq.s32.totalorder %s29, 0
      %p92 = por %p90, %p91
      %p93 = scmp.ne.s32.totalorder %s81, %s82
      %p94 = scmp.eq.s32.totalorder %s30, 1
      %p95 = por %p93, %p94
      %p97 = scmp.ne.s32.totalorder %s82, %s96
      %p98 = scmp.eq.s32.totalorder %s30, 0
      %p99 = por %p97, %p98
      %s101 = sadd.s32 %s100, 1
      %p104 = scmp.eq.s32.totalorder %s24, 1
      %p105 = scmp.ne.s32.totalorder %s100, %s102
      %p106 = scmp.eq.s32.totalorder %s24, 0
      %p107 = por %p105, %p106
      %p108 = scmp.ne.s32.totalorder %s100, %s102
      %p109 = scmp.eq.s32.totalorder %s29, 1
      %p110 = por %p108, %p109
      %p111 = scmp.ne.s32.totalorder %s102, %s103
      %p112 = scmp.eq.s32.totalorder %s29, 0
      %p113 = por %p111, %p112
      %p114 = scmp.ne.s32.totalorder %s102, %s103
      %p115 = scmp.eq.s32.totalorder %s30, 1
      %p116 = por %p114, %p115
      %p118 = scmp.ne.s32.totalorder %s103, %s117
      %p119 = scmp.eq.s32.totalorder %s30, 0
      %p120 = por %p118, %p119
      %s122 = sadd.s32 %s121, 1
      %p125 = scmp.eq.s32.totalorder %s24, 1
      %p126 = scmp.ne.s32.totalorder %s121, %s123
      %p127 = scmp.eq.s32.totalorder %s24, 0
      %p128 = por %p126, %p127
      %p129 = scmp.ne.s32.totalorder %s121, %s123
      %p130 = scmp.eq.s32.totalorder %s29, 1
      %p131 = por %p129, %p130
      %p132 = scmp.ne.s32.totalorder %s123, %s124
      %p133 = scmp.eq.s32.totalorder %s29, 0
      %p134 = por %p132, %p133
      %p135 = scmp.ne.s32.totalorder %s123, %s124
      %p136 = scmp.eq.s32.totalorder %s30, 1
      %p137 = por %p135, %p136
      %p139 = scmp.ne.s32.totalorder %s124, %s138
      %p140 = scmp.eq.s32.totalorder %s30, 0
      %p141 = por %p139, %p140
      %s143 = sadd.s32 %s142, 1
      %p146 = scmp.eq.s32.totalorder %s24, 1
      %p147 = scmp.ne.s32.totalorder %s142, %s144
      %p148 = scmp.eq.s32.totalorder %s24, 0
      %p149 = por %p147, %p148
      %p150 = scmp.ne.s32.totalorder %s142, %s144
      %p151 = scmp.eq.s32.totalorder %s29, 1
      %p152 = por %p150, %p151
      %p153 = scmp.ne.s32.totalorder %s144, %s145
      %p154 = scmp.eq.s32.totalorder %s29, 0
      %p155 = por %p153, %p154
      %p156 = scmp.ne.s32.totalorder %s144, %s145
      %p157 = scmp.eq.s32.totalorder %s30, 1
      %p158 = por %p156, %p157
      %p160 = scmp.ne.s32.totalorder %s145, %s159
      %p161 = scmp.eq.s32.totalorder %s30, 0
      %p162 = por %p160, %p161
      %s164 = sadd.s32 %s163, 1
      %p167 = scmp.eq.s32.totalorder %s24, 1
      %p168 = scmp.ne.s32.totalorder %s163, %s165
      %p169 = scmp.eq.s32.totalorder %s24, 0
      %p170 = por %p168, %p169
      %p171 = scmp.ne.s32.totalorder %s163, %s165
      %p172 = scmp.eq.s32.totalorder %s29, 1
      %p173 = por %p171, %p172
      %p174 = scmp.ne.s32.totalorder %s165, %s166
      %p175 = scmp.eq.s32.totalorder %s29, 0
      %p176 = por %p174, %p175
      %p177 = scmp.ne.s32.totalorder %s165, %s166
      %p178 = scmp.eq.s32.totalorder %s30, 1
      %p179 = por %p177, %p178
      %p181 = scmp.ne.s32.totalorder %s166, %s180
      %p182 = scmp.eq.s32.totalorder %s30, 0
      %p183 = por %p181, %p182
      %s185 = sadd.s32 %s184, 1
      %p188 = scmp.eq.s32.totalorder %s24, 1
      %p189 = scmp.ne.s32.totalorder %s184, %s186
      %p190 = scmp.eq.s32.totalorder %s24, 0
      %p191 = por %p189, %p190
      %p192 = scmp.ne.s32.totalorder %s184, %s186
      %p193 = scmp.eq.s32.totalorder %s29, 1
      %p194 = por %p192, %p193
      %p195 = scmp.ne.s32.totalorder %s186, %s187
      %p196 = scmp.eq.s32.totalorder %s29, 0
      %p197 = por %p195, %p196
      %p198 = scmp.ne.s32.totalorder %s186, %s187
      %p199 = scmp.eq.s32.totalorder %s30, 1
      %p200 = por %p198, %p199
      %p202 = scmp.ne.s32.totalorder %s187, %s201
      %p203 = scmp.eq.s32.totalorder %s30, 0
      %p204 = por %p202, %p203
      %s205 = ssub.s32 %s24, %s31
      %p206 = scmp.eq.s32.totalorder %s205, 0
      %s208 = sadd.s32 %s207, 1
      %s209 = scalar_select %p206, %s207, %s208
      %p212 = pneg %p206
      %p213 = scmp.eq.s32.totalorder %s24, 1
      %p214 = por %p212, %p213
      %p215 = scmp.ne.s32.totalorder %s207, %s210
      %p216 = scmp.eq.s32.totalorder %s24, 0
      %p217 = por %p215, %p216
      %p218 = scmp.ne.s32.totalorder %s207, %s210
      %p219 = scmp.eq.s32.totalorder %s29, 1
      %p220 = por %p218, %p219
      %p221 = scmp.ne.s32.totalorder %s210, %s211
      %p222 = scmp.eq.s32.totalorder %s29, 0
      %p223 = por %p221, %p222
      %p224 = scmp.ne.s32.totalorder %s210, %s211
      %p225 = scmp.eq.s32.totalorder %s30, 1
      %p226 = por %p224, %p225
      %p228 = scmp.ne.s32.totalorder %s211, %s227
      %p229 = scmp.eq.s32.totalorder %s30, 0
      %p230 = por %p228, %p229
      %p231 = scmp.le.s32.totalorder 1, %s24
      %p232 = scmp.lt.s32.totalorder %s24, 3
      %p233 = pnand %p231, %p232
      %p234 = pneg %p233
      // Predicated region
      $region9: #{tpu_custom_call.1} parent=5 // pred_check
        _
      $region10: #{tpu_custom_call.1} parent=5 // pred_check_branch
        %236 = sbr.rel (%p233) target = $region12
      $region11: #{tpu_custom_call.1} parent=5 // pred_region
        %s237 = ssub.s32 %s24, 1
        // Predicated region
        $region13: #{tpu_custom_call.1} parent=11 // pred_check
          %p238 = pneg %p71
        $region14: #{tpu_custom_call.1} parent=11 // pred_check_branch
          %240 = sbr.rel (%p238) target = $region16
        $region15: #{tpu_custom_call.1} parent=11 // pred_region
          %s242 = ssub.s32 1024, 1024
          %243 = vsyncadd [#allocation6], %s242
          %s244 = sshll.u32 [#allocation5], 4
          %s245 = int_to_ptr.vmem [resolvable:$true] %s244
          %250 = dma.hbm_to_vmem [thread:$0]  %s1, 1024, %s245, [#allocation6], 64, 64, 4
        $region16: #{tpu_custom_call.1} parent=11 // pred_fallthru
          _
        // Predicated region
        $region17: #{tpu_custom_call.1} parent=11 // pred_check
          %p251 = pneg %p92
        $region18: #{tpu_custom_call.1} parent=11 // pred_check_branch
          %253 = sbr.rel (%p251) target = $region20
        $region19: #{tpu_custom_call.1} parent=11 // pred_region
          %s255 = ssub.s32 16, 16
          %256 = vsyncadd [#allocation6], %s255
          %s258 = sshll.u32 [#allocation7], 4
          %s259 = int_to_ptr.vmem [resolvable:$true] %s258
          %261 = dma.hbm_to_vmem [thread:$0]  %s2, 16, %s259, [#allocation6]
        $region20: #{tpu_custom_call.1} parent=11 // pred_fallthru
          _
        // Predicated region
        $region21: #{tpu_custom_call.1} parent=11 // pred_check
          %p262 = pneg %p113
        $region22: #{tpu_custom_call.1} parent=11 // pred_check_branch
          %264 = sbr.rel (%p262) target = $region24
        $region23: #{tpu_custom_call.1} parent=11 // pred_region
          %s266 = ssub.s32 32, 32
          %267 = vsyncadd [#allocation9], %s266
          %s269 = sshll.u32 [#allocation8], 4
          %s270 = int_to_ptr.vmem [resolvable:$true] %s269
          %272 = dma.hbm_to_vmem [thread:$0]  %s3, 32, %s270, [#allocation9]
        $region24: #{tpu_custom_call.1} parent=11 // pred_fallthru
          _
        // Predicated region
        $region25: #{tpu_custom_call.1} parent=11 // pred_check
          %p273 = pneg %p134
        $region26: #{tpu_custom_call.1} parent=11 // pred_check_branch
          %275 = sbr.rel (%p273) target = $region28
        $region27: #{tpu_custom_call.1} parent=11 // pred_region
          %s277 = ssub.s32 1024, 1024
          %278 = vsyncadd [#allocation9], %s277
          %s279 = sshll.u32 [#allocation10], 4
          %s280 = int_to_ptr.vmem [resolvable:$true] %s279
          %285 = dma.hbm_to_vmem [thread:$0]  %s4, 1024, %s280, [#allocation9], 64, 64, 4
        $region28: #{tpu_custom_call.1} parent=11 // pred_fallthru
          _
        // Predicated region
        $region29: #{tpu_custom_call.1} parent=11 // pred_check
          %p286 = pneg %p155
        $region30: #{tpu_custom_call.1} parent=11 // pred_check_branch
          %288 = sbr.rel (%p286) target = $region32
        $region31: #{tpu_custom_call.1} parent=11 // pred_region
          %s290 = ssub.s32 16, 16
          %291 = vsyncadd [#allocation12], %s290
          %s293 = sshll.u32 [#allocation11], 4
          %s294 = int_to_ptr.vmem [resolvable:$true] %s293
          %296 = dma.hbm_to_vmem [thread:$0]  %s5, 16, %s294, [#allocation12]
        $region32: #{tpu_custom_call.1} parent=11 // pred_fallthru
          _
        // Predicated region
        $region33: #{tpu_custom_call.1} parent=11 // pred_check
          %p297 = pneg %p176
        $region34: #{tpu_custom_call.1} parent=11 // pred_check_branch
          %299 = sbr.rel (%p297) target = $region36
        $region35: #{tpu_custom_call.1} parent=11 // pred_region
          %s301 = ssub.s32 256, 256
          %302 = vsyncadd [#allocation12], %s301
          %s303 = sshll.u32 [#allocation13], 4
          %s304 = int_to_ptr.vmem [resolvable:$true] %s303
          %309 = dma.hbm_to_vmem [thread:$0]  %s6, 256, %s304, [#allocation12], 64, 64, 4
        $region36: #{tpu_custom_call.1} parent=11 // pred_fallthru
          _
        // Predicated region
        $region37: #{tpu_custom_call.1} parent=11 // pred_check
          %p310 = pneg %p197
        $region38: #{tpu_custom_call.1} parent=11 // pred_check_branch
          %312 = sbr.rel (%p310) target = $region40
        $region39: #{tpu_custom_call.1} parent=11 // pred_region
          %s314 = ssub.s32 16, 16
          %315 = vsyncadd [#allocation15], %s314
          %s317 = sshll.u32 [#allocation14], 4
          %s318 = int_to_ptr.vmem [resolvable:$true] %s317
          %320 = dma.hbm_to_vmem [thread:$0]  %s7, 16, %s318, [#allocation15]
        $region40: #{tpu_custom_call.1} parent=11 // pred_fallthru
          _
      $region12: #{tpu_custom_call.1} parent=5 // pred_fallthru
        _
      %p321 = scmp.lt.s32.totalorder %s24, 2
      // Predicated region
      $region41: #{tpu_custom_call.1} parent=5 // pred_check
        %p322 = pneg %p321
      $region42: #{tpu_custom_call.1} parent=5 // pred_check_branch
        %324 = sbr.rel (%p322) target = $region44
      $region43: #{tpu_custom_call.1} parent=5 // pred_region
        // Predicated region
        $region45: #{tpu_custom_call.1} parent=43 // pred_check
          %p325 = pneg %p44
        $region46: #{tpu_custom_call.1} parent=43 // pred_check_branch
          %327 = sbr.rel (%p325) target = $region48
        $region47: #{tpu_custom_call.1} parent=43 // pred_region
          %s328 = sand.u32 %s34, 1
          %s329 = scalar_lea.sflag [#allocation3], %s328
          %s330 = sand.u32 %s34, 1
          %s331 = smul.addr %s330, 128
          %s332 = scalar_lea.vmem [#allocation2], %s331
          %s334 = ssub.s32 2048, 2048
          %335 = vsyncadd %s329, %s334
          %s336 = smul.addr %s24, 32
          %s337 = smul.addr %s336, 64
          %s338 = scalar_lea.hbm %s0, %s337
          %s339 = sshll.u32 %s332, 4
          %s340 = int_to_ptr.vmem [resolvable:$true] %s339
          %345 = dma.hbm_to_vmem [thread:$0]  %s338, 2048, %s340, %s329, 64, 64, 4
        $region48: #{tpu_custom_call.1} parent=43 // pred_fallthru
          _
      $region44: #{tpu_custom_call.1} parent=5 // pred_fallthru
        _
      %p346 = scmp.le.s32.totalorder 1, %s24
      %p347 = scmp.lt.s32.totalorder %s24, 3
      %p348 = pnand %p346, %p347
      %p349 = pneg %p348
      // Predicated region
      $region49: #{tpu_custom_call.1} parent=5 // pred_check
        _
      $region50: #{tpu_custom_call.1} parent=5 // pred_check_branch
        %351 = sbr.rel (%p348) target = $region52
      $region51: #{tpu_custom_call.1} parent=5 // pred_region
        %s352 = ssub.s32 %s24, 1
        %s353 = sand.u32 %s37, 1
        %s354 = scalar_lea.sflag [#allocation3], %s353
        %s355 = sand.u32 %s37, 1
        %s356 = smul.addr %s355, 128
        %s357 = scalar_lea.vmem [#allocation2], %s356
        // Predicated region
        $region53: #{tpu_custom_call.1} parent=51 // pred_check
          %p358 = pneg %p50
        $region54: #{tpu_custom_call.1} parent=51 // pred_check_branch
          %360 = sbr.rel (%p358) target = $region56
        $region55: #{tpu_custom_call.1} parent=51 // pred_region
          %361 = dma.done %s354, 2048
        $region56: #{tpu_custom_call.1} parent=51 // pred_fallthru
          _
        // Predicated region
        $region57: #{tpu_custom_call.1} parent=51 // pred_check
          %p362 = pneg %p71
        $region58: #{tpu_custom_call.1} parent=51 // pred_check_branch
          %364 = sbr.rel (%p362) target = $region60
        $region59: #{tpu_custom_call.1} parent=51 // pred_region
          %365 = dma.done [#allocation6], 1024
        $region60: #{tpu_custom_call.1} parent=51 // pred_fallthru
          _
        // Predicated region
        $region61: #{tpu_custom_call.1} parent=51 // pred_check
          %p366 = pneg %p92
        $region62: #{tpu_custom_call.1} parent=51 // pred_check_branch
          %368 = sbr.rel (%p366) target = $region64
        $region63: #{tpu_custom_call.1} parent=51 // pred_region
          %369 = dma.done [#allocation6], 16
        $region64: #{tpu_custom_call.1} parent=51 // pred_fallthru
          _
        // Predicated region
        $region65: #{tpu_custom_call.1} parent=51 // pred_check
          %p370 = pneg %p113
        $region66: #{tpu_custom_call.1} parent=51 // pred_check_branch
          %372 = sbr.rel (%p370) target = $region68
        $region67: #{tpu_custom_call.1} parent=51 // pred_region
          %373 = dma.done [#allocation9], 32
        $region68: #{tpu_custom_call.1} parent=51 // pred_fallthru
          _
        // Predicated region
        $region69: #{tpu_custom_call.1} parent=51 // pred_check
          %p374 = pneg %p134
        $region70: #{tpu_custom_call.1} parent=51 // pred_check_branch
          %376 = sbr.rel (%p374) target = $region72
        $region71: #{tpu_custom_call.1} parent=51 // pred_region
          %377 = dma.done [#allocation9], 1024
        $region72: #{tpu_custom_call.1} parent=51 // pred_fallthru
          _
        // Predicated region
        $region73: #{tpu_custom_call.1} parent=51 // pred_check
          %p378 = pneg %p155
        $region74: #{tpu_custom_call.1} parent=51 // pred_check_branch
          %380 = sbr.rel (%p378) target = $region76
        $region75: #{tpu_custom_call.1} parent=51 // pred_region
          %381 = dma.done [#allocation12], 16
        $region76: #{tpu_custom_call.1} parent=51 // pred_fallthru
          _
        // Predicated region
        $region77: #{tpu_custom_call.1} parent=51 // pred_check
          %p382 = pneg %p176
        $region78: #{tpu_custom_call.1} parent=51 // pred_check_branch
          %384 = sbr.rel (%p382) target = $region80
        $region79: #{tpu_custom_call.1} parent=51 // pred_region
          %385 = dma.done [#allocation12], 256
        $region80: #{tpu_custom_call.1} parent=51 // pred_fallthru
          _
        // Predicated region
        $region81: #{tpu_custom_call.1} parent=51 // pred_check
          %p386 = pneg %p197
        $region82: #{tpu_custom_call.1} parent=51 // pred_check_branch
          %388 = sbr.rel (%p386) target = $region84
        $region83: #{tpu_custom_call.1} parent=51 // pred_region
          %389 = dma.done [#allocation15], 16
        $region84: #{tpu_custom_call.1} parent=51 // pred_fallthru
          _
        %s390 = sand.u32 %s37, 1
        %s391 = scalar_lea.sflag [#allocation3], %s390
        %s392 = sand.u32 %s37, 1
        %s393 = smul.addr %s392, 128
        %s394 = scalar_lea.vmem [#allocation2], %s393
        %p395 = pneg %p50
        %p396 = pneg %p47
        %p397 = pneg %p71
        %p398 = pneg %p68
        %p399 = pneg %p92
        %p400 = pneg %p89
        %p401 = pneg %p113
        %p402 = pneg %p110
        %p403 = pneg %p134
        %p404 = pneg %p131
        %p405 = pneg %p155
        %p406 = pneg %p152
        %p407 = pneg %p176
        %p408 = pneg %p173
        %p409 = pneg %p197
        %p410 = pneg %p194
        %p411 = pneg %p223
        %p412 = pneg %p220
        %s413 = sand.u32 %s210, 1
        %s414 = scalar_lea.sflag [#allocation4], %s413
        %s415 = sand.u32 %s210, 1
        %s416 = scalar_lea.vmem [#allocation16], %s415
        %v418 = vld [vmem:[%s357] sm:$0xf]
        %v419 = vld [vmem:[%s357 + $0x4] sm:$0xf]
        %v420 = vld [vmem:[%s357 + $0x8] sm:$0xf]
        %v421 = vld [vmem:[%s357 + $0xc] sm:$0xf]
        %v422 = vld [vmem:[%s357 + $0x10] sm:$0xf]
        %v423 = vld [vmem:[%s357 + $0x14] sm:$0xf]
        %v424 = vld [vmem:[%s357 + $0x18] sm:$0xf]
        %v425 = vld [vmem:[%s357 + $0x1c] sm:$0xf]
        %v426 = vld [vmem:[%s357 + $0x20] sm:$0xf]
        %v427 = vld [vmem:[%s357 + $0x24] sm:$0xf]
        %v428 = vld [vmem:[%s357 + $0x28] sm:$0xf]
        %v429 = vld [vmem:[%s357 + $0x2c] sm:$0xf]
        %v430 = vld [vmem:[%s357 + $0x30] sm:$0xf]
        %v431 = vld [vmem:[%s357 + $0x34] sm:$0xf]
        %v432 = vld [vmem:[%s357 + $0x38] sm:$0xf]
        %v433 = vld [vmem:[%s357 + $0x3c] sm:$0xf]
        %v434 = vld [vmem:[%s357 + $0x40] sm:$0xf]
        %v435 = vld [vmem:[%s357 + $0x44] sm:$0xf]
        %v436 = vld [vmem:[%s357 + $0x48] sm:$0xf]
        %v437 = vld [vmem:[%s357 + $0x4c] sm:$0xf]
        %v438 = vld [vmem:[%s357 + $0x50] sm:$0xf]
        %v439 = vld [vmem:[%s357 + $0x54] sm:$0xf]
        %v440 = vld [vmem:[%s357 + $0x58] sm:$0xf]
        %v441 = vld [vmem:[%s357 + $0x5c] sm:$0xf]
        %v442 = vld [vmem:[%s357 + $0x60] sm:$0xf]
        %v443 = vld [vmem:[%s357 + $0x64] sm:$0xf]
        %v444 = vld [vmem:[%s357 + $0x68] sm:$0xf]
        %v445 = vld [vmem:[%s357 + $0x6c] sm:$0xf]
        %v446 = vld [vmem:[%s357 + $0x70] sm:$0xf]
        %v447 = vld [vmem:[%s357 + $0x74] sm:$0xf]
        %v448 = vld [vmem:[%s357 + $0x78] sm:$0xf]
        %v449 = vld [vmem:[%s357 + $0x7c] sm:$0xf]
        %v450 = vld [vmem:[#allocation5] sm:$0xf]
        %v451 = vld [vmem:[#allocation5 + $0x4] sm:$0xf]
        %v452 = vld [vmem:[#allocation5 + $0x8] sm:$0xf]
        %v453 = vld [vmem:[#allocation5 + $0xc] sm:$0xf]
        %v454 = vld [vmem:[#allocation5 + $0x10] sm:$0xf]
        %v455 = vld [vmem:[#allocation5 + $0x14] sm:$0xf]
        %v456 = vld [vmem:[#allocation5 + $0x18] sm:$0xf]
        %v457 = vld [vmem:[#allocation5 + $0x1c] sm:$0xf]
        %v458 = vld [vmem:[#allocation5 + $0x20] sm:$0xf]
        %v459 = vld [vmem:[#allocation5 + $0x24] sm:$0xf]
        %v460 = vld [vmem:[#allocation5 + $0x28] sm:$0xf]
        %v461 = vld [vmem:[#allocation5 + $0x2c] sm:$0xf]
        %v462 = vld [vmem:[#allocation5 + $0x30] sm:$0xf]
        %v463 = vld [vmem:[#allocation5 + $0x34] sm:$0xf]
        %v464 = vld [vmem:[#allocation5 + $0x38] sm:$0xf]
        %v465 = vld [vmem:[#allocation5 + $0x3c] sm:$0xf]
        %v466 = vld [vmem:[#allocation7] sm:$0x1]
        %v468 = vlaneseq
        %v469 = vshrl.u32 %v468, 7
        %v470 = vsub.s32 0, %v469
        %v471 = vrot.slane %v466, %v470
        %v505 = vunpack.c.l.b16 %v418
        %v506 = vunpack.c.l.b16 %v419
        %v507 = vunpack.c.l.b16 %v420
        %v508 = vunpack.c.l.b16 %v421
        %v509 = vunpack.c.l.b16 %v422
        %v510 = vunpack.c.l.b16 %v423
        %v511 = vunpack.c.l.b16 %v424
        %v512 = vunpack.c.l.b16 %v425
        %v513 = vunpack.c.l.b16 %v426
        %v514 = vunpack.c.l.b16 %v427
        %v515 = vunpack.c.l.b16 %v428
        %v516 = vunpack.c.l.b16 %v429
        %v517 = vunpack.c.l.b16 %v430
        %v518 = vunpack.c.l.b16 %v431
        %v519 = vunpack.c.l.b16 %v432
        %v520 = vunpack.c.l.b16 %v433
        %v521 = vunpack.c.l.b16 %v434
        %v522 = vunpack.c.l.b16 %v435
        %v523 = vunpack.c.l.b16 %v436
        %v524 = vunpack.c.l.b16 %v437
        %v525 = vunpack.c.l.b16 %v438
        %v526 = vunpack.c.l.b16 %v439
        %v527 = vunpack.c.l.b16 %v440
        %v528 = vunpack.c.l.b16 %v441
        %v529 = vunpack.c.l.b16 %v442
        %v530 = vunpack.c.l.b16 %v443
        %v531 = vunpack.c.l.b16 %v444
        %v532 = vunpack.c.l.b16 %v445
        %v533 = vunpack.c.l.b16 %v446
        %v534 = vunpack.c.l.b16 %v447
        %v535 = vunpack.c.l.b16 %v448
        %v536 = vunpack.c.l.b16 %v449
        %v537 = vpack.c.b16 %v506, %v505
        %v538 = vpack.c.b16 %v508, %v507
        %v539 = vpack.c.b16 %v510, %v509
        %v540 = vpack.c.b16 %v512, %v511
        %v541 = vpack.c.b16 %v514, %v513
        %v542 = vpack.c.b16 %v516, %v515
        %v543 = vpack.c.b16 %v518, %v517
        %v544 = vpack.c.b16 %v520, %v519
        %v545 = vpack.c.b16 %v522, %v521
        %v546 = vpack.c.b16 %v524, %v523
        %v547 = vpack.c.b16 %v526, %v525
        %v548 = vpack.c.b16 %v528, %v527
        %v549 = vpack.c.b16 %v530, %v529
        %v550 = vpack.c.b16 %v532, %v531
        %v551 = vpack.c.b16 %v534, %v533
        %v552 = vpack.c.b16 %v536, %v535
        %v585 = vunpack.c.l.b16 %v450
        %v586 = vunpack.c.l.b16 %v451
        %v587 = vunpack.c.l.b16 %v452
        %v588 = vunpack.c.l.b16 %v453
        %v589 = vunpack.c.l.b16 %v454
        %v590 = vunpack.c.l.b16 %v455
        %v591 = vunpack.c.l.b16 %v456
        %v592 = vunpack.c.l.b16 %v457
        %v593 = vunpack.c.l.b16 %v458
        %v594 = vunpack.c.l.b16 %v459
        %v595 = vunpack.c.l.b16 %v460
        %v596 = vunpack.c.l.b16 %v461
        %v597 = vunpack.c.l.b16 %v462
        %v598 = vunpack.c.l.b16 %v463
        %v599 = vunpack.c.l.b16 %v464
        %v600 = vunpack.c.l.b16 %v465
        %v601 = vpack.c.b16 %v586, %v585
        %v602 = vpack.c.b16 %v588, %v587
        %v603 = vpack.c.b16 %v590, %v589
        %v604 = vpack.c.b16 %v592, %v591
        %v605 = vpack.c.b16 %v594, %v593
        %v606 = vpack.c.b16 %v596, %v595
        %v607 = vpack.c.b16 %v598, %v597
        %v608 = vpack.c.b16 %v600, %v599
        %617 = vmatprep.subr.bf16.mxu0 0
        %618 = vmatpush1.bf16.msra.mxu0 %v601
        %619 = vmatprep.subr.bf16.mxu0 0
        %620 = vmatpush1.bf16.msra.mxu0 %v602
        %621 = vmatprep.subr.bf16.mxu0 0
        %622 = vmatpush1.bf16.msra.mxu0 %v603
        %623 = vmatprep.subr.bf16.mxu0 0
        %624 = vmatpush1.bf16.msra.mxu0 %v604
        %625 = vmatprep.subr.bf16.mxu0 0
        %626 = vmatpush1.bf16.msra.mxu0 %v605
        %627 = vmatprep.subr.bf16.mxu0 0
        %628 = vmatpush1.bf16.msra.mxu0 %v606
        %629 = vmatprep.subr.bf16.mxu0 0
        %630 = vmatpush1.bf16.msra.mxu0 %v607
        %631 = vmatprep.subr.bf16.mxu0 0
        %632 = vmatpush1.bf16.msra.mxu0 %v608
        %633 = vmatprep.subr.bf16.mxu0 0
        %634 = vmatpush1.bf16.msra.mxu0 0
        %635 = vmatprep.subr.bf16.mxu0 0
        %636 = vmatpush1.bf16.msra.mxu0 0
        %637 = vmatprep.subr.bf16.mxu0 0
        %638 = vmatpush1.bf16.msra.mxu0 0
        %639 = vmatprep.subr.bf16.mxu0 0
        %640 = vmatpush1.bf16.msra.mxu0 0
        %641 = vmatprep.subr.bf16.mxu0 0
        %642 = vmatpush1.bf16.msra.mxu0 0
        %643 = vmatprep.subr.bf16.mxu0 0
        %644 = vmatpush1.bf16.msra.mxu0 0
        %645 = vmatprep.subr.bf16.mxu0 0
        %646 = vmatpush1.bf16.msra.mxu0 0
        %647 = vmatprep.subr.bf16.mxu0 0
        %648 = vmatpush1.bf16.msra.mxu0 0
        %649 = vmatprep.mubr.bf16.mxu0 0
        %650 = vmatmul.mubr.bf16.gmra.mrb[0].mxu0 %v537
        %v651 = vpop.f32.mrb[0].mxu0
        %v652 = vadd.f32 %v471, %v651
        %v653 = vpop.f32.mrb[0].mxu0
        %v654 = vpop.f32.mrb[0].mxu0
        %v655 = vadd.f32 %v471, %v654
        %v656 = vpop.f32.mrb[0].mxu0
        %657 = vmatprep.mubr.bf16.mxu0 0
        %658 = vmatmul.mubr.bf16.gmra.mrb[0].mxu0 %v538
        %v659 = vpop.f32.mrb[0].mxu0
        %v660 = vadd.f32 %v471, %v659
        %v661 = vpop.f32.mrb[0].mxu0
        %v662 = vpop.f32.mrb[0].mxu0
        %v663 = vadd.f32 %v471, %v662
        %v664 = vpop.f32.mrb[0].mxu0
        %665 = vmatprep.mubr.bf16.mxu0 0
        %666 = vmatmul.mubr.bf16.gmra.mrb[0].mxu0 %v539
        %v667 = vpop.f32.mrb[0].mxu0
        %v668 = vadd.f32 %v471, %v667
        %v669 = vpop.f32.mrb[0].mxu0
        %v670 = vpop.f32.mrb[0].mxu0
        %v671 = vadd.f32 %v471, %v670
        %v672 = vpop.f32.mrb[0].mxu0
        %673 = vmatprep.mubr.bf16.mxu0 0
        %674 = vmatmul.mubr.bf16.gmra.mrb[0].mxu0 %v540
        %v675 = vpop.f32.mrb[0].mxu0
        %v676 = vadd.f32 %v471, %v675
        %v677 = vpop.f32.mrb[0].mxu0
        %v678 = vpop.f32.mrb[0].mxu0
        %v679 = vadd.f32 %v471, %v678
        %v680 = vpop.f32.mrb[0].mxu0
        %681 = vmatprep.mubr.bf16.mxu0 0
        %682 = vmatmul.mubr.bf16.gmra.mrb[0].mxu0 %v541
        %v683 = vpop.f32.mrb[0].mxu0
        %v684 = vadd.f32 %v471, %v683
        %v685 = vpop.f32.mrb[0].mxu0
        %v686 = vpop.f32.mrb[0].mxu0
        %v687 = vadd.f32 %v471, %v686
        %v688 = vpop.f32.mrb[0].mxu0
        %689 = vmatprep.mubr.bf16.mxu0 0
        %690 = vmatmul.mubr.bf16.gmra.mrb[0].mxu0 %v542
        %v691 = vpop.f32.mrb[0].mxu0
        %v692 = vadd.f32 %v471, %v691
        %v693 = vpop.f32.mrb[0].mxu0
        %v694 = vpop.f32.mrb[0].mxu0
        %v695 = vadd.f32 %v471, %v694
        %v696 = vpop.f32.mrb[0].mxu0
        %697 = vmatprep.mubr.bf16.mxu0 0
        %698 = vmatmul.mubr.bf16.gmra.mrb[0].mxu0 %v543
        %v699 = vpop.f32.mrb[0].mxu0
        %v700 = vadd.f32 %v471, %v699
        %v701 = vpop.f32.mrb[0].mxu0
        %v702 = vpop.f32.mrb[0].mxu0
        %v703 = vadd.f32 %v471, %v702
        %v704 = vpop.f32.mrb[0].mxu0
        %705 = vmatprep.mubr.bf16.mxu0 0
        %706 = vmatmul.mubr.bf16.gmra.mrb[0].mxu0 %v544
        %v707 = vpop.f32.mrb[0].mxu0
        %v708 = vadd.f32 %v471, %v707
        %v709 = vpop.f32.mrb[0].mxu0
        %v710 = vpop.f32.mrb[0].mxu0
        %v711 = vadd.f32 %v471, %v710
        %v712 = vpop.f32.mrb[0].mxu0
        %713 = vmatprep.mubr.bf16.mxu0 0
        %714 = vmatmul.mubr.bf16.gmra.mrb[0].mxu0 %v545
        %v715 = vpop.f32.mrb[0].mxu0
        %v716 = vadd.f32 %v471, %v715
        %v717 = vpop.f32.mrb[0].mxu0
        %v718 = vpop.f32.mrb[0].mxu0
        %v719 = vadd.f32 %v471, %v718
        %v720 = vpop.f32.mrb[0].mxu0
        %721 = vmatprep.mubr.bf16.mxu0 0
        %722 = vmatmul.mubr.bf16.gmra.mrb[0].mxu0 %v546
        %v723 = vpop.f32.mrb[0].mxu0
        %v724 = vadd.f32 %v471, %v723
        %v725 = vpop.f32.mrb[0].mxu0
        %v726 = vpop.f32.mrb[0].mxu0
        %v727 = vadd.f32 %v471, %v726
        %v728 = vpop.f32.mrb[0].mxu0
        %729 = vmatprep.mubr.bf16.mxu0 0
        %730 = vmatmul.mubr.bf16.gmra.mrb[0].mxu0 %v547
        %v731 = vpop.f32.mrb[0].mxu0
        %v732 = vadd.f32 %v471, %v731
        %v733 = vpop.f32.mrb[0].mxu0
        %v734 = vpop.f32.mrb[0].mxu0
        %v735 = vadd.f32 %v471, %v734
        %v736 = vpop.f32.mrb[0].mxu0
        %737 = vmatprep.mubr.bf16.mxu0 0
        %738 = vmatmul.mubr.bf16.gmra.mrb[0].mxu0 %v548
        %v739 = vpop.f32.mrb[0].mxu0
        %v740 = vadd.f32 %v471, %v739
        %v741 = vpop.f32.mrb[0].mxu0
        %v742 = vpop.f32.mrb[0].mxu0
        %v743 = vadd.f32 %v471, %v742
        %v744 = vpop.f32.mrb[0].mxu0
        %745 = vmatprep.mubr.bf16.mxu0 0
        %746 = vmatmul.mubr.bf16.gmra.mrb[0].mxu0 %v549
        %v747 = vpop.f32.mrb[0].mxu0
        %v748 = vadd.f32 %v471, %v747
        %v749 = vpop.f32.mrb[0].mxu0
        %v750 = vpop.f32.mrb[0].mxu0
        %v751 = vadd.f32 %v471, %v750
        %v752 = vpop.f32.mrb[0].mxu0
        %753 = vmatprep.mubr.bf16.mxu0 0
        %754 = vmatmul.mubr.bf16.gmra.mrb[0].mxu0 %v550
        %v755 = vpop.f32.mrb[0].mxu0
        %v756 = vadd.f32 %v471, %v755
        %v757 = vpop.f32.mrb[0].mxu0
        %v758 = vpop.f32.mrb[0].mxu0
        %v759 = vadd.f32 %v471, %v758
        %v760 = vpop.f32.mrb[0].mxu0
        %761 = vmatprep.mubr.bf16.mxu0 0
        %762 = vmatmul.mubr.bf16.gmra.mrb[0].mxu0 %v551
        %v763 = vpop.f32.mrb[0].mxu0
        %v764 = vadd.f32 %v471, %v763
        %v765 = vpop.f32.mrb[0].mxu0
        %v766 = vpop.f32.mrb[0].mxu0
        %v767 = vadd.f32 %v471, %v766
        %v768 = vpop.f32.mrb[0].mxu0
        %769 = vmatprep.mubr.bf16.mxu0 0
        %770 = vmatmul.mubr.bf16.gmra.mrb[0].mxu0 %v552
        %v771 = vpop.f32.mrb[0].mxu0
        %v772 = vadd.f32 %v471, %v771
        %v773 = vpop.f32.mrb[0].mxu0
        %v774 = vpop.f32.mrb[0].mxu0
        %v775 = vadd.f32 %v471, %v774
        %v776 = vpop.f32.mrb[0].mxu0
        %777 = vdwg.mxu0
        %v778 = vmax.f32 %v652, 0.0
        %v779 = vmax.f32 %v655, 0.0
        %v780 = vmax.f32 %v660, 0.0
        %v781 = vmax.f32 %v663, 0.0
        %v782 = vmax.f32 %v668, 0.0
        %v783 = vmax.f32 %v671, 0.0
        %v784 = vmax.f32 %v676, 0.0
        %v785 = vmax.f32 %v679, 0.0
        %v786 = vmax.f32 %v684, 0.0
        %v787 = vmax.f32 %v687, 0.0
        %v788 = vmax.f32 %v692, 0.0
        %v789 = vmax.f32 %v695, 0.0
        %v790 = vmax.f32 %v700, 0.0
        %v791 = vmax.f32 %v703, 0.0
        %v792 = vmax.f32 %v708, 0.0
        %v793 = vmax.f32 %v711, 0.0
        %v794 = vmax.f32 %v716, 0.0
        %v795 = vmax.f32 %v719, 0.0
        %v796 = vmax.f32 %v724, 0.0
        %v797 = vmax.f32 %v727, 0.0
        %v798 = vmax.f32 %v732, 0.0
        %v799 = vmax.f32 %v735, 0.0
        %v800 = vmax.f32 %v740, 0.0
        %v801 = vmax.f32 %v743, 0.0
        %v802 = vmax.f32 %v748, 0.0
        %v803 = vmax.f32 %v751, 0.0
        %v804 = vmax.f32 %v756, 0.0
        %v805 = vmax.f32 %v759, 0.0
        %v806 = vmax.f32 %v764, 0.0
        %v807 = vmax.f32 %v767, 0.0
        %v808 = vmax.f32 %v772, 0.0
        %v809 = vmax.f32 %v775, 0.0
        %v810 = vld [vmem:[#allocation8] sm:$0x3]
        %v811 = vpack.c.bf16 %v779, %v778
        %v812 = vpack.c.bf16 %v781, %v780
        %v813 = vpack.c.bf16 %v783, %v782
        %v814 = vpack.c.bf16 %v785, %v784
        %v815 = vpack.c.bf16 %v787, %v786
        %v816 = vpack.c.bf16 %v789, %v788
        %v817 = vpack.c.bf16 %v791, %v790
        %v818 = vpack.c.bf16 %v793, %v792
        %v819 = vpack.c.bf16 %v795, %v794
        %v820 = vpack.c.bf16 %v797, %v796
        %v821 = vpack.c.bf16 %v799, %v798
        %v822 = vpack.c.bf16 %v801, %v800
        %v823 = vpack.c.bf16 %v803, %v802
        %v824 = vpack.c.bf16 %v805, %v804
        %v825 = vpack.c.bf16 %v807, %v806
        %v826 = vpack.c.bf16 %v809, %v808
        %v829 = vunpack.c.l.s4 1966171168
        %v830 = vunpack.c.0.s8 %v829
        %v831 = vlaneseq
        %v832 = vshrl.u32 %v831, 7
        %v833 = vsub.s32 %v830, %v832
        %v834 = vrot.slane %v810, %v833
        %v835 = vcombine.high %v834, %v834
        %v837 = vunpack.c.l.s4 1966171168
        %v838 = vunpack.c.0.s8 %v837
        %v839 = vlaneseq
        %v840 = vshrl.u32 %v839, 7
        %v841 = vsub.s32 %v838, %v840
        %v842 = vrot.slane %v834, %v841
        %v844 = vunpack.c.l.s4 1966171168
        %v845 = vunpack.c.0.s8 %v844
        %v846 = vlaneseq
        %v847 = vshrl.u32 %v846, 7
        %v848 = vsub.s32 %v845, %v847
        %v849 = vrot.slane %v835, %v848
        %852 = vmatprep.subr.bf16.mxu0 0
        %853 = vmatpush1.bf16.msra.mxu0 %v811
        %854 = vmatprep.subr.bf16.mxu0 0
        %855 = vmatpush1.bf16.msra.mxu0 %v812
        %856 = vmatprep.subr.bf16.mxu0 0
        %857 = vmatpush1.bf16.msra.mxu0 %v813
        %858 = vmatprep.subr.bf16.mxu0 0
        %859 = vmatpush1.bf16.msra.mxu0 %v814
        %860 = vmatprep.subr.bf16.mxu0 0
        %861 = vmatpush1.bf16.msra.mxu0 %v815
        %862 = vmatprep.subr.bf16.mxu0 0
        %863 = vmatpush1.bf16.msra.mxu0 %v816
        %864 = vmatprep.subr.bf16.mxu0 0
        %865 = vmatpush1.bf16.msra.mxu0 %v817
        %866 = vmatprep.subr.bf16.mxu0 0
        %867 = vmatpush1.bf16.msra.mxu0 %v818
        %868 = vmatprep.subr.bf16.mxu0 0
        %869 = vmatpush1.bf16.msra.mxu0 %v819
        %870 = vmatprep.subr.bf16.mxu0 0
        %871 = vmatpush1.bf16.msra.mxu0 %v820
        %872 = vmatprep.subr.bf16.mxu0 0
        %873 = vmatpush1.bf16.msra.mxu0 %v821
        %874 = vmatprep.subr.bf16.mxu0 0
        %875 = vmatpush1.bf16.msra.mxu0 %v822
        %876 = vmatprep.subr.bf16.mxu0 0
        %877 = vmatpush1.bf16.msra.mxu0 %v823
        %878 = vmatprep.subr.bf16.mxu0 0
        %879 = vmatpush1.bf16.msra.mxu0 %v824
        %880 = vmatprep.subr.bf16.mxu0 0
        %881 = vmatpush1.bf16.msra.mxu0 %v825
        %882 = vmatprep.subr.bf16.mxu0 0
        %883 = vmatpush1.bf16.msra.mxu0 %v826
        %884 = vmatprep.mubr.bf16.mxu0 %v849
        %885 = vmatmul.mubr.bf16.gmra.mrb[0].mxu0 %v842
        %v886 = vpop.f32.mrb[0].mxu0
        %v887 = vadd.f32 0.0, %v886
        %v888 = vpop.f32.mrb[0].mxu0
        %v889 = vpop.f32.mrb[0].mxu0
        %v890 = vpop.f32.mrb[0].mxu0
        %891 = vdwg.mxu0
        %v892 = vpack.c.bf16 %v887, %v887
        %v893 = vld [vmem:[#allocation10] sm:$0xf]
        %v894 = vld [vmem:[#allocation10 + $0x4] sm:$0xf]
        %v895 = vld [vmem:[#allocation10 + $0x8] sm:$0xf]
        %v896 = vld [vmem:[#allocation10 + $0xc] sm:$0xf]
        %v897 = vld [vmem:[#allocation10 + $0x10] sm:$0xf]
        %v898 = vld [vmem:[#allocation10 + $0x14] sm:$0xf]
        %v899 = vld [vmem:[#allocation10 + $0x18] sm:$0xf]
        %v900 = vld [vmem:[#allocation10 + $0x1c] sm:$0xf]
        %v901 = vld [vmem:[#allocation10 + $0x20] sm:$0xf]
        %v902 = vld [vmem:[#allocation10 + $0x24] sm:$0xf]
        %v903 = vld [vmem:[#allocation10 + $0x28] sm:$0xf]
        %v904 = vld [vmem:[#allocation10 + $0x2c] sm:$0xf]
        %v905 = vld [vmem:[#allocation10 + $0x30] sm:$0xf]
        %v906 = vld [vmem:[#allocation10 + $0x34] sm:$0xf]
        %v907 = vld [vmem:[#allocation10 + $0x38] sm:$0xf]
        %v908 = vld [vmem:[#allocation10 + $0x3c] sm:$0xf]
        %v909 = vld [vmem:[#allocation11] sm:$0x1]
        %v926 = vunpack.c.l.b16 %v893
        %v927 = vunpack.c.l.b16 %v894
        %v928 = vunpack.c.l.b16 %v895
        %v929 = vunpack.c.l.b16 %v896
        %v930 = vunpack.c.l.b16 %v897
        %v931 = vunpack.c.l.b16 %v898
        %v932 = vunpack.c.l.b16 %v899
        %v933 = vunpack.c.l.b16 %v900
        %v934 = vunpack.c.l.b16 %v901
        %v935 = vunpack.c.l.b16 %v902
        %v936 = vunpack.c.l.b16 %v903
        %v937 = vunpack.c.l.b16 %v904
        %v938 = vunpack.c.l.b16 %v905
        %v939 = vunpack.c.l.b16 %v906
        %v940 = vunpack.c.l.b16 %v907
        %v941 = vunpack.c.l.b16 %v908
        %v942 = vpack.c.b16 %v927, %v926
        %v943 = vpack.c.b16 %v929, %v928
        %v944 = vpack.c.b16 %v931, %v930
        %v945 = vpack.c.b16 %v933, %v932
        %v946 = vpack.c.b16 %v935, %v934
        %v947 = vpack.c.b16 %v937, %v936
        %v948 = vpack.c.b16 %v939, %v938
        %v949 = vpack.c.b16 %v941, %v940
        %958 = vmatprep.subr.bf16.mxu0 0
        %959 = vmatpush1.bf16.msra.mxu0 %v942
        %960 = vmatprep.subr.bf16.mxu0 0
        %961 = vmatpush1.bf16.msra.mxu0 %v943
        %962 = vmatprep.subr.bf16.mxu0 0
        %963 = vmatpush1.bf16.msra.mxu0 %v944
        %964 = vmatprep.subr.bf16.mxu0 0
        %965 = vmatpush1.bf16.msra.mxu0 %v945
        %966 = vmatprep.subr.bf16.mxu0 0
        %967 = vmatpush1.bf16.msra.mxu0 %v946
        %968 = vmatprep.subr.bf16.mxu0 0
        %969 = vmatpush1.bf16.msra.mxu0 %v947
        %970 = vmatprep.subr.bf16.mxu0 0
        %971 = vmatpush1.bf16.msra.mxu0 %v948
        %972 = vmatprep.subr.bf16.mxu0 0
        %973 = vmatpush1.bf16.msra.mxu0 %v949
        %974 = vmatprep.subr.bf16.mxu0 0
        %975 = vmatpush1.bf16.msra.mxu0 0
        %976 = vmatprep.subr.bf16.mxu0 0
        %977 = vmatpush1.bf16.msra.mxu0 0
        %978 = vmatprep.subr.bf16.mxu0 0
        %979 = vmatpush1.bf16.msra.mxu0 0
        %980 = vmatprep.subr.bf16.mxu0 0
        %981 = vmatpush1.bf16.msra.mxu0 0
        %982 = vmatprep.subr.bf16.mxu0 0
        %983 = vmatpush1.bf16.msra.mxu0 0
        %984 = vmatprep.subr.bf16.mxu0 0
        %985 = vmatpush1.bf16.msra.mxu0 0
        %986 = vmatprep.subr.bf16.mxu0 0
        %987 = vmatpush1.bf16.msra.mxu0 0
        %988 = vmatprep.subr.bf16.mxu0 0
        %989 = vmatpush1.bf16.msra.mxu0 0
        %990 = vmatprep.mubr.bf16.mxu0 0
        %991 = vmatmul.mubr.bf16.gmra.mrb[0].mxu0 %v892
        %v992 = vpop.f32.mrb[0].mxu0
        %v993 = vadd.f32 %v909, %v992
        %v994 = vpop.f32.mrb[0].mxu0
        %v995 = vpop.f32.mrb[0].mxu0
        %v996 = vpop.f32.mrb[0].mxu0
        %997 = vdwg.mxu0
        %v998 = vmax.f32 %v993, 0.0
        %v999 = vpack.c.bf16 %v998, %v998
        %v1000 = vld [vmem:[#allocation13] sm:$0xf]
        %v1001 = vld [vmem:[#allocation13 + $0x4] sm:$0xf]
        %v1002 = vld [vmem:[#allocation13 + $0x8] sm:$0xf]
        %v1003 = vld [vmem:[#allocation13 + $0xc] sm:$0xf]
        %v1004 = vld [vmem:[#allocation14] sm:$0x1]
        %v1009 = vunpack.c.l.b16 %v1000
        %v1010 = vunpack.c.l.b16 %v1001
        %v1011 = vunpack.c.l.b16 %v1002
        %v1012 = vunpack.c.l.b16 %v1003
        %v1013 = vpack.c.b16 %v1010, %v1009
        %v1014 = vpack.c.b16 %v1012, %v1011
        %vm1017 = vcmask 261120
        %v1019 = vsel %vm1017, %v999, 0
        %1021 = vmatprep.subr.bf16.mxu0 0
        %1022 = vmatpush1.bf16.msra.mxu0 %v1013
        %1023 = vmatprep.subr.bf16.mxu0 0
        %1024 = vmatpush1.bf16.msra.mxu0 %v1014
        %1025 = vmatprep.subr.bf16.mxu0 0
        %1026 = vmatpush1.bf16.msra.mxu0 0
        %1027 = vmatprep.subr.bf16.mxu0 0
        %1028 = vmatpush1.bf16.msra.mxu0 0
        %1029 = vmatprep.subr.bf16.mxu0 0
        %1030 = vmatpush1.bf16.msra.mxu0 0
        %1031 = vmatprep.subr.bf16.mxu0 0
        %1032 = vmatpush1.bf16.msra.mxu0 0
        %1033 = vmatprep.subr.bf16.mxu0 0
        %1034 = vmatpush1.bf16.msra.mxu0 0
        %1035 = vmatprep.subr.bf16.mxu0 0
        %1036 = vmatpush1.bf16.msra.mxu0 0
        %1037 = vmatprep.subr.bf16.mxu0 0
        %1038 = vmatpush1.bf16.msra.mxu0 0
        %1039 = vmatprep.subr.bf16.mxu0 0
        %1040 = vmatpush1.bf16.msra.mxu0 0
        %1041 = vmatprep.subr.bf16.mxu0 0
        %1042 = vmatpush1.bf16.msra.mxu0 0
        %1043 = vmatprep.subr.bf16.mxu0 0
        %1044 = vmatpush1.bf16.msra.mxu0 0
        %1045 = vmatprep.subr.bf16.mxu0 0
        %1046 = vmatpush1.bf16.msra.mxu0 0
        %1047 = vmatprep.subr.bf16.mxu0 0
        %1048 = vmatpush1.bf16.msra.mxu0 0
        %1049 = vmatprep.subr.bf16.mxu0 0
        %1050 = vmatpush1.bf16.msra.mxu0 0
        %1051 = vmatprep.subr.bf16.mxu0 0
        %1052 = vmatpush1.bf16.msra.mxu0 0
        %1053 = vmatprep.mubr.bf16.mxu0 0
        %1054 = vmatmul.mubr.bf16.gmra.mrb[0].mxu0 %v1019
        %v1055 = vpop.f32.mrb[0].mxu0
        %v1056 = vadd.f32 %v1004, %v1055
        %v1057 = vpop.f32.mrb[0].mxu0
        %v1058 = vpop.f32.mrb[0].mxu0
        %v1059 = vpop.f32.mrb[0].mxu0
        %1060 = vdwg.mxu0
        %1061 = vst [vmem:[%s416] sm:$0x1] %v1056
        %s1062 = sand.u32 %s210, 1
        %s1063 = scalar_lea.sflag [#allocation4], %s1062
        %s1064 = sand.u32 %s210, 1
        %s1065 = scalar_lea.vmem [#allocation16], %s1064
        // Predicated region
        $region85: #{tpu_custom_call.1} parent=51 // pred_check
          %p1066 = pneg %p220
        $region86: #{tpu_custom_call.1} parent=51 // pred_check_branch
          %1068 = sbr.rel (%p1066) target = $region88
        $region87: #{tpu_custom_call.1} parent=51 // pred_region
          %s1070 = ssub.s32 16, 16
          %1071 = vsyncadd %s1063, %s1070
          %s1072 = smul.addr %s29, 16
          %s1073 = scalar_lea.hbm %s8, %s1072
          %s1075 = sshll.u32 %s1065, 4
          %s1076 = int_to_ptr.vmem [resolvable:$true] %s1075
          %1078 = dma.vmem_to_hbm [thread:$0]  %s1076, 16, %s1073, %s1063
        $region88: #{tpu_custom_call.1} parent=51 // pred_fallthru
          _
      $region52: #{tpu_custom_call.1} parent=5 // pred_fallthru
        _
      %p1079 = scmp.le.s32.totalorder 2, %s24
      // Predicated region
      $region89: #{tpu_custom_call.1} parent=5 // pred_check
        %p1080 = pneg %p1079
      $region90: #{tpu_custom_call.1} parent=5 // pred_check_branch
        %1082 = sbr.rel (%p1080) target = $region92
      $region91: #{tpu_custom_call.1} parent=5 // pred_region
        %s1083 = ssub.s32 %s24, 2
        // Predicated region
        $region93: #{tpu_custom_call.1} parent=91 // pred_check
          %p1084 = pneg %p226
        $region94: #{tpu_custom_call.1} parent=91 // pred_check_branch
          %1086 = sbr.rel (%p1084) target = $region96
        $region95: #{tpu_custom_call.1} parent=91 // pred_region
          %s1087 = sand.u32 %s211, 1
          %s1088 = scalar_lea.sflag [#allocation4], %s1087
          %s1089 = sand.u32 %s211, 1
          %s1090 = scalar_lea.vmem [#allocation16], %s1089
          %1091 = dma.done %s1088, 16
        $region96: #{tpu_custom_call.1} parent=91 // pred_fallthru
          _
      $region92: #{tpu_custom_call.1} parent=5 // pred_fallthru
        _
    $region6: #{tpu_custom_call.1} parent=1 // loop_footer
      %s28 = sadd.s32 1, %s24
    $region7: #{tpu_custom_call.1} parent=1 // loop_footer_branch
      %23 = sbr.rel target = $region3
    $region8: #{tpu_custom_call.1} parent=1 // loop_exit
      _
    %1092 = vsyncpa [#allocation3], 1
    %s1093 = scalar_lea.sflag [#allocation3], 1
    %1094 = vsyncpa %s1093, 1
    %1095 = vsyncpa [#allocation6], 1
    %1096 = vsyncpa [#allocation9], 1
    %1097 = vsyncpa [#allocation12], 1
    %1098 = vsyncpa [#allocation15], 1
    %1099 = vsyncpa [#allocation4], 1
    %s1100 = scalar_lea.sflag [#allocation4], 1
    %1101 = vsyncpa %s1100, 1

</llo_original>
